<compile_context>
chip_gen: v6e
topology: v6e:2x2x1
jax: 0.10.0
libtpu: 0.0.40
codegen_flags: <defaults>
</compile_context>

<pallas_src>
import math

import jax
import jax.numpy as jnp
from jax.experimental import pallas as pl
from jax.experimental.pallas import tpu as pltpu


# ------------------------------- kernels ------------------------------------


def _noisy_linear_train_kernel(x_ref, w_mu_ref, w_sig_ref, b_mu_ref, b_sig_ref,
                               eps_in_ref, eps_out_ref, out_ref):
    x = x_ref[...]                       # (bm, In)
    eps_in = eps_in_ref[...]             # (1, In)   broadcasts over batch rows
    eps_out = eps_out_ref[...]           # (1, Out_p)

    # y = x @ W_mu + ((x*eps_in) @ W_sigma) * eps_out + b_mu + b_sigma * eps_out
    y = jnp.dot(x, w_mu_ref[...], preferred_element_type=jnp.float32)
    y_sig = jnp.dot(x * eps_in, w_sig_ref[...],
                    preferred_element_type=jnp.float32)
    y = y + y_sig * eps_out + b_mu_ref[...] + b_sig_ref[...] * eps_out
    out_ref[...] = y.astype(out_ref.dtype)


def _noisy_linear_eval_kernel(x_ref, w_mu_ref, b_mu_ref, out_ref):
    y = jnp.dot(x_ref[...], w_mu_ref[...], preferred_element_type=jnp.float32)
    out_ref[...] = (y + b_mu_ref[...]).astype(out_ref.dtype)


# ------------------------------ wrapper --------------------------------------


def _scale_noise(key, size):
    """torch: x = randn(size); sign(x) * sqrt(|x|)."""
    z = jax.random.normal(key, (size,), jnp.float32)
    return jnp.sign(z) * jnp.sqrt(jnp.abs(z))


def sample_factorized_noise(key, in_features, out_features):
    """Matches NoisyLinear.reset_noise(): factorized eps_in / eps_out rows."""
    k_in, k_out = jax.random.split(key)
    eps_in = _scale_noise(k_in, in_features).reshape(1, in_features)
    eps_out = _scale_noise(k_out, out_features).reshape(1, out_features)
    return eps_in, eps_out


def _pad_cols(a, width):
    pad = width - a.shape[-1]
    return jnp.pad(a, ((0, 0), (0, pad))) if pad else a


def noisy_linear_forward(params, x, *, training, key=None, block_b=256):
    """x: (B, in_features) -> (B, out_features); matches NoisyLinear.forward."""
    w_mu, w_sigma = params["w_mu"], params["w_sigma"]     # (in, out) pre-transposed
    b_mu, b_sigma = params["b_mu"], params["b_sigma"]     # (1, out)
    in_f, out_f = w_mu.shape
    B = x.shape[0]

    # Lane-dense output stores + full MXU N-tiles: pad out-features to mult of 128.
    out_p = max(128, ((out_f + 127) // 128) * 128)
    w_mu_p = _pad_cols(w_mu, out_p)
    b_mu_p = _pad_cols(b_mu, out_p)

    # Batch tiling: bm rows per grid step (VMEM per step is tiny; weights resident).
    bm = B if B <= block_b else block_b
    grid = (pl.cdiv(B, bm),)

    x_spec = pl.BlockSpec((bm, in_f), lambda i: (i, 0))
    out_spec = pl.BlockSpec((bm, out_p), lambda i: (i, 0))
    resident = lambda shape: pl.BlockSpec(shape, lambda i: (0, 0))
    out_shape = jax.ShapeDtypeStruct((B, out_p), jnp.float32)
    cparams = pltpu.CompilerParams(dimension_semantics=("parallel",))

    if training:
        if key is None:
            raise ValueError("training=True requires a PRNG key (reset_noise)")
        eps_in, eps_out = sample_factorized_noise(key, in_f, out_f)
        eps_out_p = _pad_cols(eps_out, out_p)
        w_sigma_p = _pad_cols(w_sigma, out_p)
        b_sigma_p = _pad_cols(b_sigma, out_p)
        y = pl.pallas_call(
            _noisy_linear_train_kernel,
            out_shape=out_shape,
            grid=grid,
            in_specs=[
                x_spec,
                resident((in_f, out_p)), resident((in_f, out_p)),
                resident((1, out_p)), resident((1, out_p)),
                resident((1, in_f)), resident((1, out_p)),
            ],
            out_specs=out_spec,
            compiler_params=cparams,
        )(x, w_mu_p, w_sigma_p, b_mu_p, b_sigma_p, eps_in, eps_out_p)
    else:
        y = pl.pallas_call(
            _noisy_linear_eval_kernel,
            out_shape=out_shape,
            grid=grid,
            in_specs=[x_spec, resident((in_f, out_p)), resident((1, out_p))],
            out_specs=out_spec,
            compiler_params=cparams,
        )(x, w_mu_p, b_mu_p)

    return y[:, :out_f]


# ------------------------------ params ---------------------------------------


def init_params(key, in_features, out_features, sigma_init=0.5):
    """Matches NoisyLinear.reset_parameters(). Weights stored as (in, out)."""
    k_w, k_b = jax.random.split(key)
    mu_range = 1.0 / math.sqrt(in_features)
    return {
        "w_mu": jax.random.uniform(k_w, (in_features, out_features), jnp.float32,
                                   -mu_range, mu_range),
        "b_mu": jax.random.uniform(k_b, (1, out_features), jnp.float32,
                                   -mu_range, mu_range),
        "w_sigma": jnp.full((in_features, out_features),
                            sigma_init / math.sqrt(in_features), jnp.float32),
        "b_sigma": jnp.full((1, out_features),
                            sigma_init / math.sqrt(out_features), jnp.float32),
    }


# ------------------------------- test ----------------------------------------

if __name__ == "__main__":
    in_features, out_features = 16, 32
    batch = 2

    key = jax.random.PRNGKey(0)
    k_params, k_x, k_noise = jax.random.split(key, 3)

    params = init_params(k_params, in_features, out_features)
    x = jax.random.normal(k_x, (batch, in_features), jnp.float32)

    # --- training mode (noisy weights) ---
    y_train = noisy_linear_forward(params, x, training=True, key=k_noise)
    jax.block_until_ready(y_train)

    # --- eval mode (mu only) ---
    y_eval = noisy_linear_forward(params, x, training=False)
    jax.block_until_ready(y_eval)

    # Pure-JAX references of the same math (same deterministic noise key).
    eps_in, eps_out = sample_factorized_noise(k_noise, in_features, out_features)
    w_eps = eps_in.reshape(in_features, 1) * eps_out.reshape(1, out_features)
    w_noisy = params["w_mu"] + params["w_sigma"] * w_eps
    b_noisy = params["b_mu"] + params["b_sigma"] * eps_out
    ref_train = x @ w_noisy + b_noisy
    ref_eval = x @ params["w_mu"] + params["b_mu"]

    assert y_train.shape == (batch, out_features)
    assert y_eval.shape == (batch, out_features)
    assert jnp.allclose(y_train, ref_train, atol=1e-5, rtol=1e-5)
    assert jnp.allclose(y_eval, ref_eval, atol=1e-5, rtol=1e-5)

    print("KERNEL_OK")
</pallas_src>

<mosaic_0001>
module attributes {stable_mosaic.version = 11 : i64} {
  func.func @_noisy_linear_train_kernel(%arg0: i32, %arg1: memref<2x16xf32, #tpu.memory_space<vmem>>, %arg2: memref<16x128xf32, #tpu.memory_space<vmem>>, %arg3: memref<16x128xf32, #tpu.memory_space<vmem>>, %arg4: memref<1x128xf32, #tpu.memory_space<vmem>>, %arg5: memref<1x128xf32, #tpu.memory_space<vmem>>, %arg6: memref<1x16xf32, #tpu.memory_space<vmem>>, %arg7: memref<1x128xf32, #tpu.memory_space<vmem>>, %arg8: memref<2x128xf32, #tpu.memory_space<vmem>>) attributes {dimension_semantics = [#tpu.dimension_semantics<parallel>], iteration_bounds = array<i64: 1>, scalar_prefetch = 0 : i64, scratch_operands = 0 : i64, tpu.core_type = #tpu.core_type<tc>, window_params = [{transform_indices = @transform_0, window_bounds = array<i64: 2, 16>}, {pipeline_mode = #tpu.pipeline_mode<synchronous>, transform_indices = @transform_1, window_bounds = array<i64: 16, 128>}, {pipeline_mode = #tpu.pipeline_mode<synchronous>, transform_indices = @transform_2, window_bounds = array<i64: 16, 128>}, {pipeline_mode = #tpu.pipeline_mode<synchronous>, transform_indices = @transform_3, window_bounds = array<i64: 1, 128>}, {pipeline_mode = #tpu.pipeline_mode<synchronous>, transform_indices = @transform_4, window_bounds = array<i64: 1, 128>}, {pipeline_mode = #tpu.pipeline_mode<synchronous>, transform_indices = @transform_5, window_bounds = array<i64: 1, 16>}, {pipeline_mode = #tpu.pipeline_mode<synchronous>, transform_indices = @transform_6, window_bounds = array<i64: 1, 128>}, {transform_indices = @transform_7, window_bounds = array<i64: 2, 128>}]} {
    %c0 = arith.constant 0 : index
    %c0_0 = arith.constant 0 : index
    %0 = vector.load %arg1[%c0, %c0_0] : memref<2x16xf32, #tpu.memory_space<vmem>>, vector<2x16xf32>
    %c0_1 = arith.constant 0 : index
    %c0_2 = arith.constant 0 : index
    %1 = vector.load %arg6[%c0_1, %c0_2] : memref<1x16xf32, #tpu.memory_space<vmem>>, vector<1x16xf32>
    %c0_3 = arith.constant 0 : index
    %c0_4 = arith.constant 0 : index
    %2 = vector.load %arg7[%c0_3, %c0_4] : memref<1x128xf32, #tpu.memory_space<vmem>>, vector<1x128xf32>
    %c0_5 = arith.constant 0 : index
    %c0_6 = arith.constant 0 : index
    %3 = vector.load %arg2[%c0_5, %c0_6] : memref<16x128xf32, #tpu.memory_space<vmem>>, vector<16x128xf32>
    %cst = arith.constant dense<0.000000e+00> : vector<2x128xf32>
    %4 = tpu.matmul %0, %3, %cst {dimension_numbers = #tpu.dot_dimension_numbers<[1], [0], [0], [1], [0, 0, 1, 1], [], []>} : vector<2x16xf32>, vector<16x128xf32>, vector<2x128xf32> -> vector<2x128xf32>
    %5 = vector.broadcast %1 : vector<1x16xf32> to vector<2x16xf32>
    %6 = arith.mulf %0, %5 : vector<2x16xf32>
    %c0_7 = arith.constant 0 : index
    %c0_8 = arith.constant 0 : index
    %7 = vector.load %arg3[%c0_7, %c0_8] : memref<16x128xf32, #tpu.memory_space<vmem>>, vector<16x128xf32>
    %cst_9 = arith.constant dense<0.000000e+00> : vector<2x128xf32>
    %8 = tpu.matmul %6, %7, %cst_9 {dimension_numbers = #tpu.dot_dimension_numbers<[1], [0], [0], [1], [0, 0, 1, 1], [], []>} : vector<2x16xf32>, vector<16x128xf32>, vector<2x128xf32> -> vector<2x128xf32>
    %9 = vector.broadcast %2 : vector<1x128xf32> to vector<2x128xf32>
    %10 = arith.mulf %8, %9 : vector<2x128xf32>
    %11 = arith.addf %4, %10 : vector<2x128xf32>
    %c0_10 = arith.constant 0 : index
    %c0_11 = arith.constant 0 : index
    %12 = vector.load %arg4[%c0_10, %c0_11] : memref<1x128xf32, #tpu.memory_space<vmem>>, vector<1x128xf32>
    %13 = vector.broadcast %12 : vector<1x128xf32> to vector<2x128xf32>
    %14 = arith.addf %11, %13 : vector<2x128xf32>
    %c0_12 = arith.constant 0 : index
    %c0_13 = arith.constant 0 : index
    %15 = vector.load %arg5[%c0_12, %c0_13] : memref<1x128xf32, #tpu.memory_space<vmem>>, vector<1x128xf32>
    %16 = arith.mulf %15, %2 : vector<1x128xf32>
    %17 = vector.broadcast %16 : vector<1x128xf32> to vector<2x128xf32>
    %18 = arith.addf %14, %17 : vector<2x128xf32>
    %c0_14 = arith.constant 0 : index
    %c0_15 = arith.constant 0 : index
    %19 = vector.load %arg8[%c0_14, %c0_15] : memref<2x128xf32, #tpu.memory_space<vmem>>, vector<2x128xf32>
    tpu.vector_store %arg8[%c0_14, %c0_15], %18 {strides = array<i32>} : memref<2x128xf32, #tpu.memory_space<vmem>>, vector<2x128xf32>,
    return
  }
  func.func @transform_0(%arg0: i32) -> (i32, i32) {
    %c0_i32 = arith.constant 0 : i32
    %c0_i32_0 = arith.constant 0 : i32
    return %arg0, %c0_i32 : i32, i32
  }
  func.func @transform_1(%arg0: i32) -> (i32, i32) {
    %c0_i32 = arith.constant 0 : i32
    %c0_i32_0 = arith.constant 0 : i32
    %c0_i32_1 = arith.constant 0 : i32
    return %c0_i32, %c0_i32_0 : i32, i32
  }
  func.func @transform_2(%arg0: i32) -> (i32, i32) {
    %c0_i32 = arith.constant 0 : i32
    %c0_i32_0 = arith.constant 0 : i32
    %c0_i32_1 = arith.constant 0 : i32
    return %c0_i32, %c0_i32_0 : i32, i32
  }
  func.func @transform_3(%arg0: i32) -> (i32, i32) {
    %c0_i32 = arith.constant 0 : i32
    %c0_i32_0 = arith.constant 0 : i32
    %c0_i32_1 = arith.constant 0 : i32
    return %c0_i32, %c0_i32_0 : i32, i32
  }
  func.func @transform_4(%arg0: i32) -> (i32, i32) {
    %c0_i32 = arith.constant 0 : i32
    %c0_i32_0 = arith.constant 0 : i32
    %c0_i32_1 = arith.constant 0 : i32
    return %c0_i32, %c0_i32_0 : i32, i32
  }
  func.func @transform_5(%arg0: i32) -> (i32, i32) {
    %c0_i32 = arith.constant 0 : i32
    %c0_i32_0 = arith.constant 0 : i32
    %c0_i32_1 = arith.constant 0 : i32
    return %c0_i32, %c0_i32_0 : i32, i32
  }
  func.func @transform_6(%arg0: i32) -> (i32, i32) {
    %c0_i32 = arith.constant 0 : i32
    %c0_i32_0 = arith.constant 0 : i32
    %c0_i32_1 = arith.constant 0 : i32
    return %c0_i32, %c0_i32_0 : i32, i32
  }
  func.func @transform_7(%arg0: i32) -> (i32, i32) {
    %c0_i32 = arith.constant 0 : i32
    %c0_i32_0 = arith.constant 0 : i32
    return %arg0, %c0_i32 : i32, i32
  }
}

</mosaic_0001>

<llo_original>
// kernel: tpu_custom_call.1
$region0: #{tpu_custom_call.1}
  #allocation0 [shape = 'u32[]', space=smem, size = 0x4, offset = 0x4, fixed_abs, tag = 'smem constant byte address 0x4 - core index']
  #allocation1 [shape = 'u32[144,128]{1,0:T(1,128)}', space=vmem, size = 0x12000, scoped, tag = 'internal scratch']
  %s0 = inlined_call_operand.hbm [shape: f32[2,16], index: 0, kind: input, shape index: {}]
  %s1 = inlined_call_operand.hbm [shape: f32[16,128], index: 1, kind: input, shape index: {}]
  %s2 = inlined_call_operand.hbm [shape: f32[16,128], index: 2, kind: input, shape index: {}]
  %s3 = inlined_call_operand.vmem [shape: f32[1,128], index: 3, kind: input, shape index: {}]
  %s4 = inlined_call_operand.vmem [shape: f32[1,128], index: 4, kind: input, shape index: {}]
  %s5 = inlined_call_operand.vmem [shape: f32[1,16], index: 5, kind: input, shape index: {}]
  %s6 = inlined_call_operand.vmem [shape: f32[1,128], index: 6, kind: input, shape index: {}]
  %s7 = inlined_call_operand.hbm [shape: f32[2,128], index: 7, kind: output, shape index: {}]
  %s8 = sld [smem:[#allocation0]]
  $region50: #{tpu_custom_call.1} parent=0
    _
  %s10 = ssub.s32 1, %s8
  %s11 = scalar_select 0, %s10, %s8
  $region1: #{tpu_custom_call.1} parent=0
    #allocation2 [shape = 'u8[1024]{0}', space=vmem, size = 0x400, scoped, tag = 'input window, operand 0, single buffered']
    #allocation3 [shape = 's32[1]{0}', space=sflag, size = 0x4, scoped, tag = 'scoped memory for tpu_custom_call.1']
    #allocation4 [shape = 's32[1]{0}', space=sflag, size = 0x4, scoped, tag = 'scoped memory for tpu_custom_call.1']
    #allocation5 [shape = 'u8[8192]{0}', space=vmem, size = 0x2000, scoped, tag = 'input window, operand 1, single buffered']
    #allocation6 [shape = 's32[1]{0}', space=sflag, size = 0x4, scoped, tag = 'scoped memory for tpu_custom_call.1']
    #allocation7 [shape = 'u8[8192]{0}', space=vmem, size = 0x2000, scoped, tag = 'input window, operand 2, single buffered']
    #allocation8 [shape = 'u8[1024]{0}', space=vmem, size = 0x400, scoped, tag = 'output window, operand 0, single buffered']
    %12 = vsyncpa [#allocation3], 0
    %13 = vsyncpa [#allocation6], 0
    %14 = vsyncpa [#allocation4], 0
    // Predicated region
    $region2: #{tpu_custom_call.1} parent=1 // pred_check
      _
    $region3: #{tpu_custom_call.1} parent=1 // pred_check_branch
      %16 = sbr.rel (0) target = $region5
    $region4: #{tpu_custom_call.1} parent=1 // pred_region
      %s18 = ssub.s32 32, 32
      %19 = vsyncadd [#allocation3], %s18
      %s21 = sshll.u32 [#allocation2], 4
      %s22 = int_to_ptr.vmem [resolvable:$true] %s21
      %24 = dma.hbm_to_vmem [thread:$0]  %s0, 32, %s22, [#allocation3]
    $region5: #{tpu_custom_call.1} parent=1 // pred_fallthru
      _
    // Predicated region
    $region6: #{tpu_custom_call.1} parent=1 // pred_check
      _
    $region7: #{tpu_custom_call.1} parent=1 // pred_check_branch
      %26 = sbr.rel (0) target = $region9
    $region8: #{tpu_custom_call.1} parent=1 // pred_region
      %s28 = ssub.s32 256, 256
      %29 = vsyncadd [#allocation6], %s28
      %s30 = sshll.u32 [#allocation5], 4
      %s31 = int_to_ptr.vmem [resolvable:$true] %s30
      %36 = dma.hbm_to_vmem [thread:$0]  %s1, 256, %s31, [#allocation6], 128, 128, 8
    $region9: #{tpu_custom_call.1} parent=1 // pred_fallthru
      _
    // Predicated region
    $region10: #{tpu_custom_call.1} parent=1 // pred_check
      _
    $region11: #{tpu_custom_call.1} parent=1 // pred_check_branch
      %38 = sbr.rel (0) target = $region13
    $region12: #{tpu_custom_call.1} parent=1 // pred_region
      %s40 = ssub.s32 256, 256
      %41 = vsyncadd [#allocation6], %s40
      %s42 = sshll.u32 [#allocation7], 4
      %s43 = int_to_ptr.vmem [resolvable:$true] %s42
      %48 = dma.hbm_to_vmem [thread:$0]  %s2, 256, %s43, [#allocation6], 128, 128, 8
    $region13: #{tpu_custom_call.1} parent=1 // pred_fallthru
      _
    // Predicated region
    $region14: #{tpu_custom_call.1} parent=1 // pred_check
      _
    $region15: #{tpu_custom_call.1} parent=1 // pred_check_branch
      %50 = sbr.rel (0) target = $region17
    $region16: #{tpu_custom_call.1} parent=1 // pred_region
      _
    $region17: #{tpu_custom_call.1} parent=1 // pred_fallthru
      _
    // Predicated region
    $region18: #{tpu_custom_call.1} parent=1 // pred_check
      _
    $region19: #{tpu_custom_call.1} parent=1 // pred_check_branch
      %52 = sbr.rel (0) target = $region21
    $region20: #{tpu_custom_call.1} parent=1 // pred_region
      _
    $region21: #{tpu_custom_call.1} parent=1 // pred_fallthru
      _
    // Predicated region
    $region22: #{tpu_custom_call.1} parent=1 // pred_check
      _
    $region23: #{tpu_custom_call.1} parent=1 // pred_check_branch
      %54 = sbr.rel (0) target = $region25
    $region24: #{tpu_custom_call.1} parent=1 // pred_region
      _
    $region25: #{tpu_custom_call.1} parent=1 // pred_fallthru
      _
    // Predicated region
    $region26: #{tpu_custom_call.1} parent=1 // pred_check
      _
    $region27: #{tpu_custom_call.1} parent=1 // pred_check_branch
      %56 = sbr.rel (0) target = $region29
    $region28: #{tpu_custom_call.1} parent=1 // pred_region
      _
    $region29: #{tpu_custom_call.1} parent=1 // pred_fallthru
      _
    // Predicated region
    $region30: #{tpu_custom_call.1} parent=1 // pred_check
      _
    $region31: #{tpu_custom_call.1} parent=1 // pred_check_branch
      %58 = sbr.rel (0) target = $region33
    $region32: #{tpu_custom_call.1} parent=1 // pred_region
      %59 = dma.done [#allocation3], 32
    $region33: #{tpu_custom_call.1} parent=1 // pred_fallthru
      _
    // Predicated region
    $region34: #{tpu_custom_call.1} parent=1 // pred_check
      _
    $region35: #{tpu_custom_call.1} parent=1 // pred_check_branch
      %61 = sbr.rel (0) target = $region37
    $region36: #{tpu_custom_call.1} parent=1 // pred_region
      %62 = dma.done [#allocation6], 256
    $region37: #{tpu_custom_call.1} parent=1 // pred_fallthru
      _
    // Predicated region
    $region38: #{tpu_custom_call.1} parent=1 // pred_check
      _
    $region39: #{tpu_custom_call.1} parent=1 // pred_check_branch
      %64 = sbr.rel (0) target = $region41
    $region40: #{tpu_custom_call.1} parent=1 // pred_region
      %65 = dma.done [#allocation6], 256
    $region41: #{tpu_custom_call.1} parent=1 // pred_fallthru
      _
    %v66 = vld [vmem:[#allocation2] sm:$0x3]
    %v67 = vld [vmem:[%s5] sm:$0x1]
    %v68 = vld [vmem:[%s6] sm:$0x1]
    %v69 = vld [vmem:[#allocation5] sm:$0xff]
    %v70 = vld [vmem:[#allocation5 + $0x8] sm:$0xff]
    %v72 = vlaneseq
    %v73 = vshrl.u32 %v72, 7
    %v74 = vsub.s32 0, %v73
    %v75 = vrot.slane %v67, %v74
    %v77 = vmul.f32 %v66, %v75
    %v78 = vld [vmem:[#allocation7] sm:$0xff]
    %v79 = vld [vmem:[#allocation7 + $0x8] sm:$0xff]
    %vm80 = vcmask 130048
    %v82 = vsel %vm80, %v77, 0
    %84 = vmatprep.subr.mxu0 0.0
    %85 = vmatpush1.msra.mxu0 0.0
    %86 = vmatprep.subr.mxu0 0.0
    %87 = vmatpush1.msra.mxu0 0.0
    %88 = vmatprep.subr.mxu0 0.0
    %89 = vmatpush1.msra.mxu0 0.0
    %90 = vmatprep.subr.mxu0 0.0
    %91 = vmatpush1.msra.mxu0 0.0
    %92 = vmatprep.subr.mxu0 0.0
    %93 = vmatpush1.msra.mxu0 0.0
    %94 = vmatprep.subr.mxu0 0.0
    %95 = vmatpush1.msra.mxu0 0.0
    %96 = vmatprep.subr.mxu0 0.0
    %97 = vmatpush1.msra.mxu0 0.0
    %98 = vmatprep.subr.mxu0 0.0
    %99 = vmatpush1.msra.mxu0 0.0
    %100 = vmatprep.subr.mxu0 0.0
    %101 = vmatpush1.msra.mxu0 0.0
    %102 = vmatprep.subr.mxu0 0.0
    %103 = vmatpush1.msra.mxu0 0.0
    %104 = vmatprep.subr.mxu0 0.0
    %105 = vmatpush1.msra.mxu0 0.0
    %106 = vmatprep.subr.mxu0 0.0
    %107 = vmatpush1.msra.mxu0 0.0
    %108 = vmatprep.subr.mxu0 0.0
    %109 = vmatpush1.msra.mxu0 0.0
    %110 = vmatprep.subr.mxu0 0.0
    %111 = vmatpush1.msra.mxu0 0.0
    %112 = vmatprep.subr.mxu0 0.0
    %113 = vmatpush1.msra.mxu0 %v79
    %114 = vmatprep.subr.mxu0 0.0
    %115 = vmatpush1.msra.mxu0 %v78
    %116 = vmatprep.subr.mxu0 0.0
    %117 = vmatpush2.msra.mxu0 0.0
    %118 = vmatprep.subr.mxu0 0.0
    %119 = vmatpush2.msra.mxu0 0.0
    %120 = vmatprep.subr.mxu0 0.0
    %121 = vmatpush2.msra.mxu0 0.0
    %122 = vmatprep.subr.mxu0 0.0
    %123 = vmatpush2.msra.mxu0 0.0
    %124 = vmatprep.subr.mxu0 0.0
    %125 = vmatpush2.msra.mxu0 0.0
    %126 = vmatprep.subr.mxu0 0.0
    %127 = vmatpush2.msra.mxu0 0.0
    %128 = vmatprep.subr.mxu0 0.0
    %129 = vmatpush2.msra.mxu0 0.0
    %130 = vmatprep.subr.mxu0 0.0
    %131 = vmatpush2.msra.mxu0 0.0
    %132 = vmatprep.subr.mxu0 0.0
    %133 = vmatpush2.msra.mxu0 0.0
    %134 = vmatprep.subr.mxu0 0.0
    %135 = vmatpush2.msra.mxu0 0.0
    %136 = vmatprep.subr.mxu0 0.0
    %137 = vmatpush2.msra.mxu0 0.0
    %138 = vmatprep.subr.mxu0 0.0
    %139 = vmatpush2.msra.mxu0 0.0
    %140 = vmatprep.subr.mxu0 0.0
    %141 = vmatpush2.msra.mxu0 0.0
    %142 = vmatprep.subr.mxu0 0.0
    %143 = vmatpush2.msra.mxu0 0.0
    %144 = vmatprep.subr.mxu0 0.0
    %145 = vmatpush2.msra.mxu0 0.0
    %146 = vmatprep.subr.mxu0 0.0
    %147 = vmatpush2.msra.mxu0 0.0
    %148 = vmatprep.mubr.f32.mxu0 0.0
    %149 = vmatmul.mubr.f32.gmra.mxu0 %v82
    %v150 = vpop.f32.mrf.mxu0
    %v151 = vadd.f32 0.0, %v150
    %v152 = vpop.f32.mrf.mxu0
    %153 = vdwg.mxu0
    %v155 = vlaneseq
    %v156 = vshrl.u32 %v155, 7
    %v157 = vsub.s32 0, %v156
    %v158 = vrot.slane %v68, %v157
    %v160 = vmul.f32 %v151, %v158
    %v162 = vsel %vm80, %v66, 0
    %164 = vmatprep.subr.mxu0 0.0
    %165 = vmatpush1.msra.mxu0 0.0
    %166 = vmatprep.subr.mxu0 0.0
    %167 = vmatpush1.msra.mxu0 0.0
    %168 = vmatprep.subr.mxu0 0.0
    %169 = vmatpush1.msra.mxu0 0.0
    %170 = vmatprep.subr.mxu0 0.0
    %171 = vmatpush1.msra.mxu0 0.0
    %172 = vmatprep.subr.mxu0 0.0
    %173 = vmatpush1.msra.mxu0 0.0
    %174 = vmatprep.subr.mxu0 0.0
    %175 = vmatpush1.msra.mxu0 0.0
    %176 = vmatprep.subr.mxu0 0.0
    %177 = vmatpush1.msra.mxu0 0.0
    %178 = vmatprep.subr.mxu0 0.0
    %179 = vmatpush1.msra.mxu0 0.0
    %180 = vmatprep.subr.mxu0 0.0
    %181 = vmatpush1.msra.mxu0 0.0
    %182 = vmatprep.subr.mxu0 0.0
    %183 = vmatpush1.msra.mxu0 0.0
    %184 = vmatprep.subr.mxu0 0.0
    %185 = vmatpush1.msra.mxu0 0.0
    %186 = vmatprep.subr.mxu0 0.0
    %187 = vmatpush1.msra.mxu0 0.0
    %188 = vmatprep.subr.mxu0 0.0
    %189 = vmatpush1.msra.mxu0 0.0
    %190 = vmatprep.subr.mxu0 0.0
    %191 = vmatpush1.msra.mxu0 0.0
    %192 = vmatprep.subr.mxu0 0.0
    %193 = vmatpush1.msra.mxu0 %v70
    %194 = vmatprep.subr.mxu0 0.0
    %195 = vmatpush1.msra.mxu0 %v69
    %196 = vmatprep.subr.mxu0 0.0
    %197 = vmatpush2.msra.mxu0 0.0
    %198 = vmatprep.subr.mxu0 0.0
    %199 = vmatpush2.msra.mxu0 0.0
    %200 = vmatprep.subr.mxu0 0.0
    %201 = vmatpush2.msra.mxu0 0.0
    %202 = vmatprep.subr.mxu0 0.0
    %203 = vmatpush2.msra.mxu0 0.0
    %204 = vmatprep.subr.mxu0 0.0
    %205 = vmatpush2.msra.mxu0 0.0
    %206 = vmatprep.subr.mxu0 0.0
    %207 = vmatpush2.msra.mxu0 0.0
    %208 = vmatprep.subr.mxu0 0.0
    %209 = vmatpush2.msra.mxu0 0.0
    %210 = vmatprep.subr.mxu0 0.0
    %211 = vmatpush2.msra.mxu0 0.0
    %212 = vmatprep.subr.mxu0 0.0
    %213 = vmatpush2.msra.mxu0 0.0
    %214 = vmatprep.subr.mxu0 0.0
    %215 = vmatpush2.msra.mxu0 0.0
    %216 = vmatprep.subr.mxu0 0.0
    %217 = vmatpush2.msra.mxu0 0.0
    %218 = vmatprep.subr.mxu0 0.0
    %219 = vmatpush2.msra.mxu0 0.0
    %220 = vmatprep.subr.mxu0 0.0
    %221 = vmatpush2.msra.mxu0 0.0
    %222 = vmatprep.subr.mxu0 0.0
    %223 = vmatpush2.msra.mxu0 0.0
    %224 = vmatprep.subr.mxu0 0.0
    %225 = vmatpush2.msra.mxu0 0.0
    %226 = vmatprep.subr.mxu0 0.0
    %227 = vmatpush2.msra.mxu0 0.0
    %228 = vmatprep.mubr.f32.mxu0 0.0
    %229 = vmatmul.mubr.f32.gmra.mxu0 %v162
    %v230 = vpop.f32.mrf.mxu0
    %v231 = vadd.f32 %v160, %v230
    %v232 = vpop.f32.mrf.mxu0
    %233 = vdwg.mxu0
    %v234 = vld [vmem:[%s3] sm:$0x1]
    %v236 = vlaneseq
    %v237 = vshrl.u32 %v236, 7
    %v238 = vsub.s32 0, %v237
    %v239 = vrot.slane %v234, %v238
    %v241 = vadd.f32 %v231, %v239
    %v242 = vld [vmem:[%s4] sm:$0x1]
    %v243 = vmul.f32 %v242, %v68
    %v245 = vlaneseq
    %v246 = vshrl.u32 %v245, 7
    %v247 = vsub.s32 0, %v246
    %v248 = vrot.slane %v243, %v247
    %v250 = vadd.f32 %v241, %v248
    %251 = vst [vmem:[#allocation8] sm:$0x3] %v250
    // Predicated region
    $region42: #{tpu_custom_call.1} parent=1 // pred_check
      _
    $region43: #{tpu_custom_call.1} parent=1 // pred_check_branch
      %253 = sbr.rel (0) target = $region45
    $region44: #{tpu_custom_call.1} parent=1 // pred_region
      %s255 = ssub.s32 32, 32
      %256 = vsyncadd [#allocation4], %s255
      %s258 = sshll.u32 [#allocation8], 4
      %s259 = int_to_ptr.vmem [resolvable:$true] %s258
      %261 = dma.vmem_to_hbm [thread:$0]  %s259, 32, %s7, [#allocation4]
    $region45: #{tpu_custom_call.1} parent=1 // pred_fallthru
      _
    // Predicated region
    $region46: #{tpu_custom_call.1} parent=1 // pred_check
      _
    $region47: #{tpu_custom_call.1} parent=1 // pred_check_branch
      %263 = sbr.rel (0) target = $region49
    $region48: #{tpu_custom_call.1} parent=1 // pred_region
      %264 = dma.done [#allocation4], 32
    $region49: #{tpu_custom_call.1} parent=1 // pred_fallthru
      _
    %265 = vsyncpa [#allocation3], 1
    %266 = vsyncpa [#allocation6], 1
    %267 = vsyncpa [#allocation4], 1

</llo_original>
